<compile_context>
chip_gen: v7x
topology: tpu7x:2x2x1
jax: 0.10.0
libtpu: 0.0.40
codegen_flags: <defaults>
</compile_context>

<pallas_src>
import jax
import jax.numpy as jnp
from jax.experimental import pallas as pl
from jax.experimental.pallas import tpu as pltpu

_LANES = 128


def _weighted_sum_kernel(w_ref, h_ref, o_ref):
    """o = sum_l w[l] * h[l]   (gamma already folded into w in the wrapper).

    w_ref : SMEM scalar-prefetch ref, shape (L,), f32 (= gamma * bert_weights)
    h_ref : VMEM tile (L, tm, 128) of the flattened hidden states
    o_ref : VMEM output tile (tm, 128)
    """
    num_layers = h_ref.shape[0]              # static (13) -> fully unrolled
    acc = h_ref[0].astype(jnp.float32) * w_ref[0]
    for l in range(1, num_layers):
        acc = acc + h_ref[l].astype(jnp.float32) * w_ref[l]
    o_ref[...] = acc.astype(o_ref.dtype)


def _pick_tm(num_rows):
    """Default tile height: big lane-dense tiles for the HBM roofline,
    multiple of 8 sublanes, capped so the parallel axis has >= 2 blocks
    (both v7x TensorCores busy) and the double-buffered (13, tm, 128) f32
    blocks (~14 KiB/row) fit the smallest default scoped VMEM (v5e 16 MiB):
    tm=512 -> ~7 MiB total."""
    if num_rows <= 8:
        return num_rows            # block == full array dims: always legal
    tm = min(512, num_rows // 2)   # >= 2 blocks for megacore sharding
    return max(8, (tm // 8) * 8)


def bert_weighted_embed(hidden_states, bert_weights, bert_gamma, *, tm=None):
    """hidden_states: [L, B, S, H]; bert_weights: [L, 1]; bert_gamma: [1, 1].

    Returns gamma * sum_l (w_l * hidden_states[l])  -> [B, S, H]
    """
    L, B, S, H = hidden_states.shape
    out_dtype = hidden_states.dtype

    # Fold gamma into the per-layer weights (13-element host-side op) so the
    # kernel has no finalize pass at all.
    w_scaled = (bert_gamma.reshape(()).astype(jnp.float32)
                * bert_weights.reshape(L).astype(jnp.float32))

    # Lane-dense layout: the reduction is purely elementwise over L, so the
    # layout of the non-L axes is free — flatten them and tile as (rows, 128).
    n = B * S * H
    n_pad = pl.cdiv(n, _LANES) * _LANES
    h = hidden_states.reshape(L, n)
    if n_pad != n:
        h = jnp.pad(h, ((0, 0), (0, n_pad - n)))
    m = n_pad // _LANES
    h = h.reshape(L, m, _LANES)

    if tm is None:
        tm = _pick_tm(m)
    m_pad = pl.cdiv(m, tm) * tm
    if m_pad != m:
        # Zero-pad so every tile is a full block (no masked tail stores);
        # padded rows contribute only zeros and are sliced off below.
        h = jnp.pad(h, ((0, 0), (0, m_pad - m), (0, 0)))

    grid = (m_pad // tm,)

    out = pl.pallas_call(
        _weighted_sum_kernel,
        out_shape=jax.ShapeDtypeStruct((m_pad, _LANES), out_dtype),
        grid_spec=pltpu.PrefetchScalarGridSpec(
            num_scalar_prefetch=1,               # fused (gamma * weights) -> SMEM
            grid=grid,
            in_specs=[
                # Full 13-layer stack per tile: the reduction lives inside the
                # block, the accumulator lives in registers/compute stream,
                # and there is exactly one grid step per output tile.
                pl.BlockSpec((L, tm, _LANES), lambda i, w: (0, i, 0)),
            ],
            out_specs=pl.BlockSpec((tm, _LANES), lambda i, w: (i, 0)),
        ),
        compiler_params=pltpu.CompilerParams(
            dimension_semantics=("parallel",)),
    )(w_scaled, h)

    return out.reshape(m_pad * _LANES)[:n].reshape(B, S, H)


def init_bert_embedder_params(key, num_layers=13):
    """Deterministic xavier_normal_ init matching the PyTorch module."""
    kw, kg = jax.random.split(key)
    # xavier_normal_ on (13, 1): std = sqrt(2 / (fan_in + fan_out)) = sqrt(2/14)
    w_std = (2.0 / (num_layers + 1)) ** 0.5
    bert_weights = jax.random.normal(kw, (num_layers, 1), jnp.float32) * w_std
    # xavier_normal_ on (1, 1): std = sqrt(2 / 2) = 1
    bert_gamma = jax.random.normal(kg, (1, 1), jnp.float32) * 1.0
    return bert_weights, bert_gamma


if __name__ == "__main__":
    key = jax.random.PRNGKey(0)
    k_params, k_hidden = jax.random.split(key)

    L, B, S, H = 13, 2, 8, 32  # 13 = embedding layer + 12 transformer layers

    bert_weights, bert_gamma = init_bert_embedder_params(k_params, num_layers=L)

    # TODO(synk): BertModel(input_ids, ...) forward is a full pretrained
    # transformer; its hidden_states output is synthesized here instead.
    hidden_states = jax.random.normal(k_hidden, (L, B, S, H), jnp.float32)

    out = bert_weighted_embed(hidden_states, bert_weights, bert_gamma)
    out = jax.block_until_ready(out)

    # Pure-JAX reference for correctness.
    ref = bert_gamma.reshape(()) * jnp.sum(
        bert_weights.reshape(L, 1, 1, 1) * hidden_states, axis=0)

    assert out.shape == (B, S, H), out.shape
    assert jnp.allclose(out, ref, atol=1e-5, rtol=1e-5), \
        float(jnp.max(jnp.abs(out - ref)))

    print("KERNEL_OK")
</pallas_src>

<mosaic_0001>
module attributes {stable_mosaic.version = 11 : i64} {
  func.func @_weighted_sum_kernel(%arg0: i32, %arg1: memref<13xf32, #tpu.memory_space<smem>>, %arg2: memref<13x4x128xf32, #tpu.memory_space<vmem>>, %arg3: memref<4x128xf32, #tpu.memory_space<vmem>>) attributes {dimension_semantics = [#tpu.dimension_semantics<parallel>], iteration_bounds = array<i64: 1>, scalar_prefetch = 1 : i64, scratch_operands = 0 : i64, tpu.core_type = #tpu.core_type<tc>, window_params = [{transform_indices = @transform_0, window_bounds = array<i64: 13, 4, 128>}, {transform_indices = @transform_1, window_bounds = array<i64: 4, 128>}]} {
    %c0 = arith.constant 0 : index
    %c0_0 = arith.constant 0 : index
    %c0_1 = arith.constant 0 : index
    %0 = vector.load %arg2[%c0, %c0_0, %c0_1] : memref<13x4x128xf32, #tpu.memory_space<vmem>>, vector<1x4x128xf32>
    %1 = vector.shape_cast %0 : vector<1x4x128xf32> to vector<4x128xf32>
    %c0_2 = arith.constant 0 : index
    %2 = memref.load %arg1[%c0_2] : memref<13xf32, #tpu.memory_space<smem>>
    %3 = vector.broadcast %2 : f32 to vector<4x128xf32>
    %4 = arith.mulf %1, %3 : vector<4x128xf32>
    %c1 = arith.constant 1 : index
    %c0_3 = arith.constant 0 : index
    %c0_4 = arith.constant 0 : index
    %5 = vector.load %arg2[%c1, %c0_3, %c0_4] : memref<13x4x128xf32, #tpu.memory_space<vmem>>, vector<1x4x128xf32>
    %6 = vector.shape_cast %5 : vector<1x4x128xf32> to vector<4x128xf32>
    %c1_5 = arith.constant 1 : index
    %7 = memref.load %arg1[%c1_5] : memref<13xf32, #tpu.memory_space<smem>>
    %8 = vector.broadcast %7 : f32 to vector<4x128xf32>
    %9 = arith.mulf %6, %8 : vector<4x128xf32>
    %10 = arith.addf %4, %9 : vector<4x128xf32>
    %c2 = arith.constant 2 : index
    %c0_6 = arith.constant 0 : index
    %c0_7 = arith.constant 0 : index
    %11 = vector.load %arg2[%c2, %c0_6, %c0_7] : memref<13x4x128xf32, #tpu.memory_space<vmem>>, vector<1x4x128xf32>
    %12 = vector.shape_cast %11 : vector<1x4x128xf32> to vector<4x128xf32>
    %c2_8 = arith.constant 2 : index
    %13 = memref.load %arg1[%c2_8] : memref<13xf32, #tpu.memory_space<smem>>
    %14 = vector.broadcast %13 : f32 to vector<4x128xf32>
    %15 = arith.mulf %12, %14 : vector<4x128xf32>
    %16 = arith.addf %10, %15 : vector<4x128xf32>
    %c3 = arith.constant 3 : index
    %c0_9 = arith.constant 0 : index
    %c0_10 = arith.constant 0 : index
    %17 = vector.load %arg2[%c3, %c0_9, %c0_10] : memref<13x4x128xf32, #tpu.memory_space<vmem>>, vector<1x4x128xf32>
    %18 = vector.shape_cast %17 : vector<1x4x128xf32> to vector<4x128xf32>
    %c3_11 = arith.constant 3 : index
    %19 = memref.load %arg1[%c3_11] : memref<13xf32, #tpu.memory_space<smem>>
    %20 = vector.broadcast %19 : f32 to vector<4x128xf32>
    %21 = arith.mulf %18, %20 : vector<4x128xf32>
    %22 = arith.addf %16, %21 : vector<4x128xf32>
    %c4 = arith.constant 4 : index
    %c0_12 = arith.constant 0 : index
    %c0_13 = arith.constant 0 : index
    %23 = vector.load %arg2[%c4, %c0_12, %c0_13] : memref<13x4x128xf32, #tpu.memory_space<vmem>>, vector<1x4x128xf32>
    %24 = vector.shape_cast %23 : vector<1x4x128xf32> to vector<4x128xf32>
    %c4_14 = arith.constant 4 : index
    %25 = memref.load %arg1[%c4_14] : memref<13xf32, #tpu.memory_space<smem>>
    %26 = vector.broadcast %25 : f32 to vector<4x128xf32>
    %27 = arith.mulf %24, %26 : vector<4x128xf32>
    %28 = arith.addf %22, %27 : vector<4x128xf32>
    %c5 = arith.constant 5 : index
    %c0_15 = arith.constant 0 : index
    %c0_16 = arith.constant 0 : index
    %29 = vector.load %arg2[%c5, %c0_15, %c0_16] : memref<13x4x128xf32, #tpu.memory_space<vmem>>, vector<1x4x128xf32>
    %30 = vector.shape_cast %29 : vector<1x4x128xf32> to vector<4x128xf32>
    %c5_17 = arith.constant 5 : index
    %31 = memref.load %arg1[%c5_17] : memref<13xf32, #tpu.memory_space<smem>>
    %32 = vector.broadcast %31 : f32 to vector<4x128xf32>
    %33 = arith.mulf %30, %32 : vector<4x128xf32>
    %34 = arith.addf %28, %33 : vector<4x128xf32>
    %c6 = arith.constant 6 : index
    %c0_18 = arith.constant 0 : index
    %c0_19 = arith.constant 0 : index
    %35 = vector.load %arg2[%c6, %c0_18, %c0_19] : memref<13x4x128xf32, #tpu.memory_space<vmem>>, vector<1x4x128xf32>
    %36 = vector.shape_cast %35 : vector<1x4x128xf32> to vector<4x128xf32>
    %c6_20 = arith.constant 6 : index
    %37 = memref.load %arg1[%c6_20] : memref<13xf32, #tpu.memory_space<smem>>
    %38 = vector.broadcast %37 : f32 to vector<4x128xf32>
    %39 = arith.mulf %36, %38 : vector<4x128xf32>
    %40 = arith.addf %34, %39 : vector<4x128xf32>
    %c7 = arith.constant 7 : index
    %c0_21 = arith.constant 0 : index
    %c0_22 = arith.constant 0 : index
    %41 = vector.load %arg2[%c7, %c0_21, %c0_22] : memref<13x4x128xf32, #tpu.memory_space<vmem>>, vector<1x4x128xf32>
    %42 = vector.shape_cast %41 : vector<1x4x128xf32> to vector<4x128xf32>
    %c7_23 = arith.constant 7 : index
    %43 = memref.load %arg1[%c7_23] : memref<13xf32, #tpu.memory_space<smem>>
    %44 = vector.broadcast %43 : f32 to vector<4x128xf32>
    %45 = arith.mulf %42, %44 : vector<4x128xf32>
    %46 = arith.addf %40, %45 : vector<4x128xf32>
    %c8 = arith.constant 8 : index
    %c0_24 = arith.constant 0 : index
    %c0_25 = arith.constant 0 : index
    %47 = vector.load %arg2[%c8, %c0_24, %c0_25] : memref<13x4x128xf32, #tpu.memory_space<vmem>>, vector<1x4x128xf32>
    %48 = vector.shape_cast %47 : vector<1x4x128xf32> to vector<4x128xf32>
    %c8_26 = arith.constant 8 : index
    %49 = memref.load %arg1[%c8_26] : memref<13xf32, #tpu.memory_space<smem>>
    %50 = vector.broadcast %49 : f32 to vector<4x128xf32>
    %51 = arith.mulf %48, %50 : vector<4x128xf32>
    %52 = arith.addf %46, %51 : vector<4x128xf32>
    %c9 = arith.constant 9 : index
    %c0_27 = arith.constant 0 : index
    %c0_28 = arith.constant 0 : index
    %53 = vector.load %arg2[%c9, %c0_27, %c0_28] : memref<13x4x128xf32, #tpu.memory_space<vmem>>, vector<1x4x128xf32>
    %54 = vector.shape_cast %53 : vector<1x4x128xf32> to vector<4x128xf32>
    %c9_29 = arith.constant 9 : index
    %55 = memref.load %arg1[%c9_29] : memref<13xf32, #tpu.memory_space<smem>>
    %56 = vector.broadcast %55 : f32 to vector<4x128xf32>
    %57 = arith.mulf %54, %56 : vector<4x128xf32>
    %58 = arith.addf %52, %57 : vector<4x128xf32>
    %c10 = arith.constant 10 : index
    %c0_30 = arith.constant 0 : index
    %c0_31 = arith.constant 0 : index
    %59 = vector.load %arg2[%c10, %c0_30, %c0_31] : memref<13x4x128xf32, #tpu.memory_space<vmem>>, vector<1x4x128xf32>
    %60 = vector.shape_cast %59 : vector<1x4x128xf32> to vector<4x128xf32>
    %c10_32 = arith.constant 10 : index
    %61 = memref.load %arg1[%c10_32] : memref<13xf32, #tpu.memory_space<smem>>
    %62 = vector.broadcast %61 : f32 to vector<4x128xf32>
    %63 = arith.mulf %60, %62 : vector<4x128xf32>
    %64 = arith.addf %58, %63 : vector<4x128xf32>
    %c11 = arith.constant 11 : index
    %c0_33 = arith.constant 0 : index
    %c0_34 = arith.constant 0 : index
    %65 = vector.load %arg2[%c11, %c0_33, %c0_34] : memref<13x4x128xf32, #tpu.memory_space<vmem>>, vector<1x4x128xf32>
    %66 = vector.shape_cast %65 : vector<1x4x128xf32> to vector<4x128xf32>
    %c11_35 = arith.constant 11 : index
    %67 = memref.load %arg1[%c11_35] : memref<13xf32, #tpu.memory_space<smem>>
    %68 = vector.broadcast %67 : f32 to vector<4x128xf32>
    %69 = arith.mulf %66, %68 : vector<4x128xf32>
    %70 = arith.addf %64, %69 : vector<4x128xf32>
    %c12 = arith.constant 12 : index
    %c0_36 = arith.constant 0 : index
    %c0_37 = arith.constant 0 : index
    %71 = vector.load %arg2[%c12, %c0_36, %c0_37] : memref<13x4x128xf32, #tpu.memory_space<vmem>>, vector<1x4x128xf32>
    %72 = vector.shape_cast %71 : vector<1x4x128xf32> to vector<4x128xf32>
    %c12_38 = arith.constant 12 : index
    %73 = memref.load %arg1[%c12_38] : memref<13xf32, #tpu.memory_space<smem>>
    %74 = vector.broadcast %73 : f32 to vector<4x128xf32>
    %75 = arith.mulf %72, %74 : vector<4x128xf32>
    %76 = arith.addf %70, %75 : vector<4x128xf32>
    %c0_39 = arith.constant 0 : index
    %c0_40 = arith.constant 0 : index
    %77 = vector.load %arg3[%c0_39, %c0_40] : memref<4x128xf32, #tpu.memory_space<vmem>>, vector<4x128xf32>
    tpu.vector_store %arg3[%c0_39, %c0_40], %76 {strides = array<i32>} : memref<4x128xf32, #tpu.memory_space<vmem>>, vector<4x128xf32>,
    return
  }
  func.func @transform_0(%arg0: i32, %arg1: memref<13xf32, #tpu.memory_space<smem>>) -> (i32, i32, i32) {
    %c0_i32 = arith.constant 0 : i32
    %c0_i32_0 = arith.constant 0 : i32
    %c0_i32_1 = arith.constant 0 : i32
    return %c0_i32, %arg0, %c0_i32_0 : i32, i32, i32
  }
  func.func @transform_1(%arg0: i32, %arg1: memref<13xf32, #tpu.memory_space<smem>>) -> (i32, i32) {
    %c0_i32 = arith.constant 0 : i32
    %c0_i32_0 = arith.constant 0 : i32
    return %arg0, %c0_i32 : i32, i32
  }
}

</mosaic_0001>

<llo_original>
// kernel: tpu_custom_call.1
$region0: #{tpu_custom_call.1}
  #allocation0 [shape = 'u32[]', space=smem, size = 0x4, offset = 0x4, fixed_abs, tag = 'smem constant byte address 0x4 - core index']
  #allocation1 [shape = 'u32[144,128]{1,0:T(1,128)}', space=vmem, size = 0x12000, scoped, tag = 'internal scratch']
  #allocation2 [shape = 's32[1]{0}', space=sflag, size = 0x4, scoped, tag = 'scoped memory for tpu_custom_call.1']
  #allocation3 [shape = 'u8[512]{0}', space=smem, size = 0x200, scoped, tag = 'prefetched SMEM operand 0']
  %s0 = inlined_call_operand.hbm [shape: f32[13], index: 0, kind: input, shape index: {}]
  %s1 = inlined_call_operand.hbm [shape: f32[13,4,128], index: 1, kind: input, shape index: {}]
  %s2 = inlined_call_operand.hbm [shape: f32[4,128], index: 2, kind: output, shape index: {}]
  %s3 = sld [smem:[#allocation0]]
  $region18: #{tpu_custom_call.1} parent=0
    _
  %s5 = ssub.s32 1, %s3
  %s6 = scalar_select 0, %s5, %s3
  %8 = dma.hbm_to_smem %s0, 16, [#allocation3], [#allocation2]
  %9 = dma.done [#allocation2], 16
  %10 = sfence
  $region1: #{tpu_custom_call.1} parent=0
    #allocation4 [shape = 'u8[26624]{0}', space=vmem, size = 0x6800, scoped, tag = 'input window, operand 1, single buffered']
    #allocation5 [shape = 's32[1]{0}', space=sflag, size = 0x4, scoped, tag = 'scoped memory for tpu_custom_call.1']
    #allocation6 [shape = 's32[1]{0}', space=sflag, size = 0x4, scoped, tag = 'scoped memory for tpu_custom_call.1']
    #allocation7 [shape = 'u8[2048]{0}', space=vmem, size = 0x800, scoped, tag = 'output window, operand 0, single buffered']
    %11 = vsyncpa [#allocation5], 0
    %12 = vsyncpa [#allocation6], 0
    // Predicated region
    $region2: #{tpu_custom_call.1} parent=1 // pred_check
      _
    $region3: #{tpu_custom_call.1} parent=1 // pred_check_branch
      %14 = sbr.rel (0) target = $region5
    $region4: #{tpu_custom_call.1} parent=1 // pred_region
      %s16 = ssub.s32 832, 832
      %17 = vsyncadd [#allocation5], %s16
      %s18 = sshll.u32 [#allocation4], 4
      %s19 = int_to_ptr.vmem [resolvable:$true] %s18
      %24 = dma.hbm_to_vmem [thread:$0]  %s1, 832, %s19, [#allocation5], 64, 64, 4
    $region5: #{tpu_custom_call.1} parent=1 // pred_fallthru
      _
    // Predicated region
    $region6: #{tpu_custom_call.1} parent=1 // pred_check
      _
    $region7: #{tpu_custom_call.1} parent=1 // pred_check_branch
      %26 = sbr.rel (0) target = $region9
    $region8: #{tpu_custom_call.1} parent=1 // pred_region
      %27 = dma.done [#allocation5], 832
    $region9: #{tpu_custom_call.1} parent=1 // pred_fallthru
      _
    %v28 = vld [vmem:[#allocation4] sm:$0xf]
    %s29 = sld [smem:[#allocation3]]
    %v30 = vstv %s29
    %v31 = vmul.f32 %v28, %v30
    %s32 = scalar_lea.vmem [#allocation4], 4
    %v33 = vld [vmem:[%s32] sm:$0xf]
    %s34 = sld [smem:[#allocation3 + $0x1]]
    %v35 = vstv %s34
    %v36 = vmul.f32 %v33, %v35
    %v37 = vadd.f32 %v31, %v36
    %s38 = scalar_lea.vmem [#allocation4], 8
    %v39 = vld [vmem:[%s38] sm:$0xf]
    %s40 = sld [smem:[#allocation3 + $0x2]]
    %v41 = vstv %s40
    %v42 = vmul.f32 %v39, %v41
    %v43 = vadd.f32 %v37, %v42
    %s44 = scalar_lea.vmem [#allocation4], 12
    %v45 = vld [vmem:[%s44] sm:$0xf]
    %s46 = sld [smem:[#allocation3 + $0x3]]
    %v47 = vstv %s46
    %v48 = vmul.f32 %v45, %v47
    %v49 = vadd.f32 %v43, %v48
    %s50 = scalar_lea.vmem [#allocation4], 16
    %v51 = vld [vmem:[%s50] sm:$0xf]
    %s52 = sld [smem:[#allocation3 + $0x4]]
    %v53 = vstv %s52
    %v54 = vmul.f32 %v51, %v53
    %v55 = vadd.f32 %v49, %v54
    %s56 = scalar_lea.vmem [#allocation4], 20
    %v57 = vld [vmem:[%s56] sm:$0xf]
    %s58 = sld [smem:[#allocation3 + $0x5]]
    %v59 = vstv %s58
    %v60 = vmul.f32 %v57, %v59
    %v61 = vadd.f32 %v55, %v60
    %s62 = scalar_lea.vmem [#allocation4], 24
    %v63 = vld [vmem:[%s62] sm:$0xf]
    %s64 = sld [smem:[#allocation3 + $0x6]]
    %v65 = vstv %s64
    %v66 = vmul.f32 %v63, %v65
    %v67 = vadd.f32 %v61, %v66
    %s68 = scalar_lea.vmem [#allocation4], 28
    %v69 = vld [vmem:[%s68] sm:$0xf]
    %s70 = sld [smem:[#allocation3 + $0x7]]
    %v71 = vstv %s70
    %v72 = vmul.f32 %v69, %v71
    %v73 = vadd.f32 %v67, %v72
    %s74 = scalar_lea.vmem [#allocation4], 32
    %v75 = vld [vmem:[%s74] sm:$0xf]
    %s76 = sld [smem:[#allocation3 + $0x8]]
    %v77 = vstv %s76
    %v78 = vmul.f32 %v75, %v77
    %v79 = vadd.f32 %v73, %v78
    %s80 = scalar_lea.vmem [#allocation4], 36
    %v81 = vld [vmem:[%s80] sm:$0xf]
    %s82 = sld [smem:[#allocation3 + $0x9]]
    %v83 = vstv %s82
    %v84 = vmul.f32 %v81, %v83
    %v85 = vadd.f32 %v79, %v84
    %s86 = scalar_lea.vmem [#allocation4], 40
    %v87 = vld [vmem:[%s86] sm:$0xf]
    %s88 = sld [smem:[#allocation3 + $0xa]]
    %v89 = vstv %s88
    %v90 = vmul.f32 %v87, %v89
    %v91 = vadd.f32 %v85, %v90
    %s92 = scalar_lea.vmem [#allocation4], 44
    %v93 = vld [vmem:[%s92] sm:$0xf]
    %s94 = sld [smem:[#allocation3 + $0xb]]
    %v95 = vstv %s94
    %v96 = vmul.f32 %v93, %v95
    %v97 = vadd.f32 %v91, %v96
    %s98 = scalar_lea.vmem [#allocation4], 48
    %v99 = vld [vmem:[%s98] sm:$0xf]
    %s100 = sld [smem:[#allocation3 + $0xc]]
    %v101 = vstv %s100
    %v102 = vmul.f32 %v99, %v101
    %v103 = vadd.f32 %v97, %v102
    %104 = vst [vmem:[#allocation7] sm:$0xf] %v103
    // Predicated region
    $region10: #{tpu_custom_call.1} parent=1 // pred_check
      _
    $region11: #{tpu_custom_call.1} parent=1 // pred_check_branch
      %106 = sbr.rel (0) target = $region13
    $region12: #{tpu_custom_call.1} parent=1 // pred_region
      %s108 = ssub.s32 64, 64
      %109 = vsyncadd [#allocation6], %s108
      %s111 = sshll.u32 [#allocation7], 4
      %s112 = int_to_ptr.vmem [resolvable:$true] %s111
      %114 = dma.vmem_to_hbm [thread:$0]  %s112, 64, %s2, [#allocation6]
    $region13: #{tpu_custom_call.1} parent=1 // pred_fallthru
      _
    // Predicated region
    $region14: #{tpu_custom_call.1} parent=1 // pred_check
      _
    $region15: #{tpu_custom_call.1} parent=1 // pred_check_branch
      %116 = sbr.rel (0) target = $region17
    $region16: #{tpu_custom_call.1} parent=1 // pred_region
      %117 = dma.done [#allocation6], 64
    $region17: #{tpu_custom_call.1} parent=1 // pred_fallthru
      _
    %118 = vsyncpa [#allocation5], 1
    %119 = vsyncpa [#allocation6], 1

</llo_original>
